<compile_context>
chip_gen: v7x
topology: tpu7x:2x2x1
jax: 0.10.0
libtpu: 0.0.40
codegen_flags: <defaults>
</compile_context>

<pallas_src>
import jax
import jax.numpy as jnp
from jax.experimental import pallas as pl
from jax.experimental.pallas import tpu as pltpu

IN_DIM = 24
HID_DIM = 30
OUT_DIM = 16          # basenet_list_output_num
BN_EPS = 1e-5

PACK = 8              # batch rows packed per kernel row (PACK * OUT_DIM = 128 lanes)
TILE_ROWS_MAX = 32768 # rows_p = 4096 -> ~13 MiB double-buffered working set
TARGET_STEPS = 8      # keep >=4 grid steps so v7x's two TCs both engage; caps pad waste ~12.5%

assert PACK * OUT_DIM == 128, "lane-dense packing assumes 8 * 16 = 128 output lanes"


def _round_up(x, m):
    return (x + m - 1) // m * m


def _choose_tile_rows(n):
    """Adaptive tile: ~TARGET_STEPS grid steps, multiple of 64 rows, capped."""
    per_step = _round_up(-(-n // TARGET_STEPS), 64)   # ceil(n/steps) rounded to 64
    return max(64, min(per_step, TILE_ROWS_MAX))


def _netf_kernel(x_ref, w1_ref, s1_ref, w2_ref, b2_ref, o_ref):
    # x_ref : (rows_p, PACK*IN_DIM)             8 batch rows packed per kernel row
    # w1_ref: (PACK*IN_DIM, PACK*HID_DIM)       block-diagonal, BN+bias folded in
    # s1_ref: (1, PACK*HID_DIM)                 folded bias+BN shift (tiled)
    # w2_ref: (PACK*HID_DIM, PACK*OUT_DIM)      block-diagonal second Linear
    # b2_ref: (1, PACK*OUT_DIM)                 second bias (tiled)
    h = jnp.dot(x_ref[...], w1_ref[...], preferred_element_type=jnp.float32)
    h = jnp.maximum(h + s1_ref[...], 0.0)       # Linear + BN(eval) fused, then ReLU
    # Dropout(0.5): identity in eval mode.
    o = jnp.dot(h, w2_ref[...], preferred_element_type=jnp.float32)
    o_ref[...] = (o + b2_ref[...]).astype(o_ref.dtype)


def fold_params(params):
    """Fold eval-mode BN + bias into Linear1 and expand both Linears to
    PACK-way block-diagonal form for lane-dense packed I/O."""
    inv_std = 1.0 / jnp.sqrt(params["running_var"] + BN_EPS)
    scale = params["gamma"] * inv_std                        # (1, HID)
    shift = params["beta"] - params["running_mean"] * scale  # (1, HID)
    w1_eff = params["w1"] * scale                            # (IN, HID)
    s1_eff = params["b1"] * scale + shift                    # (1, HID)

    eye = jnp.eye(PACK, dtype=jnp.float32)
    return {
        "w1": jnp.kron(eye, w1_eff),              # (PACK*IN, PACK*HID)  = (192, 240)
        "s1": jnp.tile(s1_eff, (1, PACK)),        # (1, PACK*HID)        = (1, 240)
        "w2": jnp.kron(eye, params["w2"]),        # (PACK*HID, PACK*OUT) = (240, 128)
        "b2": jnp.tile(params["b2"], (1, PACK)),  # (1, PACK*OUT)        = (1, 128)
    }


def our_netf_forward(x, folded, *, tile_rows=None):
    """x: (N, IN_DIM) float32.  folded: output of fold_params(params)."""
    n = x.shape[0]
    if n == 0:                                    # guard zero-length grid
        return jnp.zeros((0, OUT_DIM), jnp.float32)

    if tile_rows is None:
        tile_rows = _choose_tile_rows(n)
    assert tile_rows % 64 == 0, "tile_rows must be a multiple of 64 (PACK * 8 sublanes)"

    n_pad = _round_up(n, tile_rows)
    if n_pad != n:
        x = jnp.pad(x, ((0, n_pad - n), (0, 0)))   # zero rows: finite garbage, sliced off

    xp = x.reshape(n_pad // PACK, PACK * IN_DIM)   # lane-dense packed input (free reshape)
    rows_p = tile_rows // PACK                     # packed rows per grid step (multiple of 8)
    grid = (n_pad // tile_rows,)

    w1, s1, w2, b2 = folded["w1"], folded["s1"], folded["w2"], folded["b2"]
    const = lambda shape: pl.BlockSpec(shape, lambda i: (0, 0))  # VMEM-resident operands

    # Size scoped VMEM to the actual working set: double-buffered streaming
    # blocks + (conservatively double-buffered) weights + slack.  Capped at
    # 32 MiB so v7x (64 MiB physical per TC) keeps headroom.
    in_block_bytes = rows_p * PACK * IN_DIM * 4
    out_block_bytes = rows_p * PACK * OUT_DIM * 4
    weight_bytes = 4 * (w1.size + s1.size + w2.size + b2.size)
    vmem_bytes = 2 * (in_block_bytes + out_block_bytes) + 2 * weight_bytes + (2 << 20)
    vmem_bytes = int(min(max(vmem_bytes, 16 << 20), 32 << 20))

    out_p = pl.pallas_call(
        _netf_kernel,
        out_shape=jax.ShapeDtypeStruct((n_pad // PACK, PACK * OUT_DIM), jnp.float32),
        grid=grid,
        in_specs=[
            # Streaming operand; default depth-2 double buffering hides the
            # contiguous HBM DMA at this block size.
            pl.BlockSpec((rows_p, PACK * IN_DIM), lambda i: (i, 0)),
            const(w1.shape),
            const(s1.shape),
            const(w2.shape),
            const(b2.shape),
        ],
        out_specs=pl.BlockSpec((rows_p, PACK * OUT_DIM), lambda i: (i, 0)),
        compiler_params=pltpu.CompilerParams(
            dimension_semantics=("parallel",),     # shard batch steps across TCs (v7x)
            vmem_limit_bytes=vmem_bytes,
        ),
    )(xp, w1, s1, w2, b2)

    return out_p.reshape(n_pad, OUT_DIM)[:n]


def init_params(key):
    """Deterministic init mimicking PyTorch defaults (uniform fan-in bounds)."""
    k1, k2, k3, k4, k5, k6 = jax.random.split(key, 6)

    bound1 = 1.0 / jnp.sqrt(IN_DIM)
    w1 = jax.random.uniform(k1, (IN_DIM, HID_DIM), jnp.float32, -bound1, bound1)
    b1 = jax.random.uniform(k2, (1, HID_DIM), jnp.float32, -bound1, bound1)

    bound2 = 1.0 / jnp.sqrt(HID_DIM)
    w2 = jax.random.uniform(k3, (HID_DIM, OUT_DIM), jnp.float32, -bound2, bound2)
    b2 = jax.random.uniform(k4, (1, OUT_DIM), jnp.float32, -bound2, bound2)

    # BatchNorm1d params / running stats (non-trivial deterministic values).
    gamma = 1.0 + 0.1 * jax.random.normal(k5, (1, HID_DIM), jnp.float32)
    beta = 0.1 * jax.random.normal(k6, (1, HID_DIM), jnp.float32)
    running_mean = jnp.zeros((1, HID_DIM), jnp.float32)
    running_var = jnp.ones((1, HID_DIM), jnp.float32)

    return {
        "w1": w1, "b1": b1, "w2": w2, "b2": b2,
        "gamma": gamma, "beta": beta,
        "running_mean": running_mean, "running_var": running_var,
    }


def reference_forward(x, params):
    """Plain-JAX eval-mode reference: Linear -> BatchNorm1d(eval) -> ReLU
    -> Dropout(identity) -> Linear.  BN is applied in its folded affine form
    (exact algebraic identity) so the f32 comparison stays tight."""
    inv_std = 1.0 / jnp.sqrt(params["running_var"] + BN_EPS)
    scale = params["gamma"] * inv_std
    shift = params["beta"] - params["running_mean"] * scale
    h = x @ (params["w1"] * scale) + (params["b1"] * scale + shift)
    h = jnp.maximum(h, 0.0)
    return h @ params["w2"] + params["b2"]


if __name__ == "__main__":
    key = jax.random.PRNGKey(0)
    kx, kp, kx2 = jax.random.split(key, 3)

    params = init_params(kp)
    folded = fold_params(params)

    # Small batch (single grid step, adaptive tile clamps to 64 rows).
    batch = 8
    x = jax.random.normal(kx, (batch, IN_DIM), jnp.float32)
    out = jax.block_until_ready(our_netf_forward(x, folded))
    ref = reference_forward(x, params)
    assert out.shape == (batch, OUT_DIM)
    # Tolerance absorbs default-precision MXU rounding differences (XLA vs Mosaic).
    assert jnp.allclose(out, ref, atol=1e-4, rtol=1e-4), "mismatch vs reference (small)"

    # Ragged batch exercising adaptive multi-step grid + tail zero-padding
    # (2500 rows -> tile_rows=320, 8 grid steps, 60 padded rows sliced off).
    batch2 = 2500
    x2 = jax.random.normal(kx2, (batch2, IN_DIM), jnp.float32)
    out2 = jax.block_until_ready(our_netf_forward(x2, folded))
    ref2 = reference_forward(x2, params)
    assert out2.shape == (batch2, OUT_DIM)
    assert jnp.allclose(out2, ref2, atol=1e-4, rtol=1e-4), "mismatch vs reference (tiled)"

    print("KERNEL_OK")
</pallas_src>

<mosaic_0001>
module attributes {stable_mosaic.version = 11 : i64} {
  func.func @_netf_kernel(%arg0: i32, %arg1: memref<8x192xf32, #tpu.memory_space<vmem>>, %arg2: memref<192x240xf32, #tpu.memory_space<vmem>>, %arg3: memref<1x240xf32, #tpu.memory_space<vmem>>, %arg4: memref<240x128xf32, #tpu.memory_space<vmem>>, %arg5: memref<1x128xf32, #tpu.memory_space<vmem>>, %arg6: memref<8x128xf32, #tpu.memory_space<vmem>>) attributes {dimension_semantics = [#tpu.dimension_semantics<parallel>], iteration_bounds = array<i64: 1>, scalar_prefetch = 0 : i64, scratch_operands = 0 : i64, tpu.core_type = #tpu.core_type<tc>, window_params = [{transform_indices = @transform_0, window_bounds = array<i64: 8, 192>}, {pipeline_mode = #tpu.pipeline_mode<synchronous>, transform_indices = @transform_1, window_bounds = array<i64: 192, 240>}, {pipeline_mode = #tpu.pipeline_mode<synchronous>, transform_indices = @transform_2, window_bounds = array<i64: 1, 240>}, {pipeline_mode = #tpu.pipeline_mode<synchronous>, transform_indices = @transform_3, window_bounds = array<i64: 240, 128>}, {pipeline_mode = #tpu.pipeline_mode<synchronous>, transform_indices = @transform_4, window_bounds = array<i64: 1, 128>}, {transform_indices = @transform_5, window_bounds = array<i64: 8, 128>}]} {
    %c0 = arith.constant 0 : index
    %c0_0 = arith.constant 0 : index
    %0 = vector.load %arg1[%c0, %c0_0] : memref<8x192xf32, #tpu.memory_space<vmem>>, vector<8x192xf32>
    %c0_1 = arith.constant 0 : index
    %c0_2 = arith.constant 0 : index
    %1 = vector.load %arg2[%c0_1, %c0_2] : memref<192x240xf32, #tpu.memory_space<vmem>>, vector<192x240xf32>
    %cst = arith.constant dense<0.000000e+00> : vector<8x240xf32>
    %2 = tpu.matmul %0, %1, %cst {dimension_numbers = #tpu.dot_dimension_numbers<[1], [0], [0], [1], [0, 0, 1, 1], [], []>} : vector<8x192xf32>, vector<192x240xf32>, vector<8x240xf32> -> vector<8x240xf32>
    %c0_3 = arith.constant 0 : index
    %c0_4 = arith.constant 0 : index
    %3 = vector.load %arg3[%c0_3, %c0_4] : memref<1x240xf32, #tpu.memory_space<vmem>>, vector<1x240xf32>
    %4 = vector.broadcast %3 : vector<1x240xf32> to vector<8x240xf32>
    %5 = arith.addf %2, %4 : vector<8x240xf32>
    %cst_5 = arith.constant 0.000000e+00 : f32
    %6 = vector.broadcast %cst_5 : f32 to vector<8x240xf32>
    %7 = arith.maximumf %5, %6 : vector<8x240xf32>
    %c0_6 = arith.constant 0 : index
    %c0_7 = arith.constant 0 : index
    %8 = vector.load %arg4[%c0_6, %c0_7] : memref<240x128xf32, #tpu.memory_space<vmem>>, vector<240x128xf32>
    %cst_8 = arith.constant dense<0.000000e+00> : vector<8x128xf32>
    %9 = tpu.matmul %7, %8, %cst_8 {dimension_numbers = #tpu.dot_dimension_numbers<[1], [0], [0], [1], [0, 0, 1, 1], [], []>} : vector<8x240xf32>, vector<240x128xf32>, vector<8x128xf32> -> vector<8x128xf32>
    %c0_9 = arith.constant 0 : index
    %c0_10 = arith.constant 0 : index
    %10 = vector.load %arg5[%c0_9, %c0_10] : memref<1x128xf32, #tpu.memory_space<vmem>>, vector<1x128xf32>
    %11 = vector.broadcast %10 : vector<1x128xf32> to vector<8x128xf32>
    %12 = arith.addf %9, %11 : vector<8x128xf32>
    %c0_11 = arith.constant 0 : index
    %c0_12 = arith.constant 0 : index
    %13 = vector.load %arg6[%c0_11, %c0_12] : memref<8x128xf32, #tpu.memory_space<vmem>>, vector<8x128xf32>
    tpu.vector_store %arg6[%c0_11, %c0_12], %12 {strides = array<i32>} : memref<8x128xf32, #tpu.memory_space<vmem>>, vector<8x128xf32>,
    return
  }
  func.func @transform_0(%arg0: i32) -> (i32, i32) {
    %c0_i32 = arith.constant 0 : i32
    %c0_i32_0 = arith.constant 0 : i32
    return %arg0, %c0_i32 : i32, i32
  }
  func.func @transform_1(%arg0: i32) -> (i32, i32) {
    %c0_i32 = arith.constant 0 : i32
    %c0_i32_0 = arith.constant 0 : i32
    %c0_i32_1 = arith.constant 0 : i32
    return %c0_i32, %c0_i32_0 : i32, i32
  }
  func.func @transform_2(%arg0: i32) -> (i32, i32) {
    %c0_i32 = arith.constant 0 : i32
    %c0_i32_0 = arith.constant 0 : i32
    %c0_i32_1 = arith.constant 0 : i32
    return %c0_i32, %c0_i32_0 : i32, i32
  }
  func.func @transform_3(%arg0: i32) -> (i32, i32) {
    %c0_i32 = arith.constant 0 : i32
    %c0_i32_0 = arith.constant 0 : i32
    %c0_i32_1 = arith.constant 0 : i32
    return %c0_i32, %c0_i32_0 : i32, i32
  }
  func.func @transform_4(%arg0: i32) -> (i32, i32) {
    %c0_i32 = arith.constant 0 : i32
    %c0_i32_0 = arith.constant 0 : i32
    %c0_i32_1 = arith.constant 0 : i32
    return %c0_i32, %c0_i32_0 : i32, i32
  }
  func.func @transform_5(%arg0: i32) -> (i32, i32) {
    %c0_i32 = arith.constant 0 : i32
    %c0_i32_0 = arith.constant 0 : i32
    return %arg0, %c0_i32 : i32, i32
  }
}

</mosaic_0001>

<llo_original>
// kernel: tpu_custom_call.1
$region0: #{tpu_custom_call.1}
  #allocation0 [shape = 'u32[]', space=smem, size = 0x4, offset = 0x4, fixed_abs, tag = 'smem constant byte address 0x4 - core index']
  #allocation1 [shape = 'u32[144,128]{1,0:T(1,128)}', space=vmem, size = 0x12000, scoped, tag = 'internal scratch']
  %s0 = inlined_call_operand.hbm [shape: f32[8,192], index: 0, kind: input, shape index: {}]
  %s1 = inlined_call_operand.hbm [shape: f32[192,240], index: 1, kind: input, shape index: {}]
  %s2 = inlined_call_operand.vmem [shape: f32[1,240], index: 2, kind: input, shape index: {}]
  %s3 = inlined_call_operand.hbm [shape: f32[240,128], index: 3, kind: input, shape index: {}]
  %s4 = inlined_call_operand.vmem [shape: f32[1,128], index: 4, kind: input, shape index: {}]
  %s5 = inlined_call_operand.hbm [shape: f32[8,128], index: 5, kind: output, shape index: {}]
  %s6 = sld [smem:[#allocation0]]
  $region42: #{tpu_custom_call.1} parent=0
    _
  %s8 = ssub.s32 1, %s6
  %s9 = scalar_select 0, %s8, %s6
  $region1: #{tpu_custom_call.1} parent=0
    #allocation2 [shape = 'u8[8192]{0}', space=vmem, size = 0x2000, scoped, tag = 'input window, operand 0, single buffered']
    #allocation3 [shape = 's32[1]{0}', space=sflag, size = 0x4, scoped, tag = 'scoped memory for tpu_custom_call.1']
    #allocation4 [shape = 's32[1]{0}', space=sflag, size = 0x4, scoped, tag = 'scoped memory for tpu_custom_call.1']
    #allocation5 [shape = 'u8[196608]{0}', space=vmem, size = 0x30000, scoped, tag = 'input window, operand 1, single buffered']
    #allocation6 [shape = 's32[1]{0}', space=sflag, size = 0x4, scoped, tag = 'scoped memory for tpu_custom_call.1']
    #allocation7 [shape = 'u8[122880]{0}', space=vmem, size = 0x1e000, scoped, tag = 'input window, operand 3, single buffered']
    #allocation8 [shape = 'u8[4096]{0}', space=vmem, size = 0x1000, scoped, tag = 'output window, operand 0, single buffered']
    %10 = vsyncpa [#allocation3], 0
    %11 = vsyncpa [#allocation6], 0
    %12 = vsyncpa [#allocation4], 0
    // Predicated region
    $region2: #{tpu_custom_call.1} parent=1 // pred_check
      _
    $region3: #{tpu_custom_call.1} parent=1 // pred_check_branch
      %14 = sbr.rel (0) target = $region5
    $region4: #{tpu_custom_call.1} parent=1 // pred_region
      %s16 = ssub.s32 256, 256
      %17 = vsyncadd [#allocation3], %s16
      %s19 = sshll.u32 [#allocation2], 4
      %s20 = int_to_ptr.vmem [resolvable:$true] %s19
      %22 = dma.hbm_to_vmem [thread:$0]  %s0, 256, %s20, [#allocation3]
    $region5: #{tpu_custom_call.1} parent=1 // pred_fallthru
      _
    // Predicated region
    $region6: #{tpu_custom_call.1} parent=1 // pred_check
      _
    $region7: #{tpu_custom_call.1} parent=1 // pred_check_branch
      %24 = sbr.rel (0) target = $region9
    $region8: #{tpu_custom_call.1} parent=1 // pred_region
      %s26 = ssub.s32 6144, 6144
      %27 = vsyncadd [#allocation6], %s26
      %s28 = sshll.u32 [#allocation5], 4
      %s29 = int_to_ptr.vmem [resolvable:$true] %s28
      %34 = dma.hbm_to_vmem [thread:$0]  %s1, 6144, %s29, [#allocation6], 256, 256, 16
    $region9: #{tpu_custom_call.1} parent=1 // pred_fallthru
      _
    // Predicated region
    $region10: #{tpu_custom_call.1} parent=1 // pred_check
      _
    $region11: #{tpu_custom_call.1} parent=1 // pred_check_branch
      %36 = sbr.rel (0) target = $region13
    $region12: #{tpu_custom_call.1} parent=1 // pred_region
      _
    $region13: #{tpu_custom_call.1} parent=1 // pred_fallthru
      _
    // Predicated region
    $region14: #{tpu_custom_call.1} parent=1 // pred_check
      _
    $region15: #{tpu_custom_call.1} parent=1 // pred_check_branch
      %38 = sbr.rel (0) target = $region17
    $region16: #{tpu_custom_call.1} parent=1 // pred_region
      %s40 = ssub.s32 3840, 3840
      %41 = vsyncadd [#allocation6], %s40
      %s42 = sshll.u32 [#allocation7], 4
      %s43 = int_to_ptr.vmem [resolvable:$true] %s42
      %48 = dma.hbm_to_vmem [thread:$0]  %s3, 3840, %s43, [#allocation6], 128, 128, 8
    $region17: #{tpu_custom_call.1} parent=1 // pred_fallthru
      _
    // Predicated region
    $region18: #{tpu_custom_call.1} parent=1 // pred_check
      _
    $region19: #{tpu_custom_call.1} parent=1 // pred_check_branch
      %50 = sbr.rel (0) target = $region21
    $region20: #{tpu_custom_call.1} parent=1 // pred_region
      _
    $region21: #{tpu_custom_call.1} parent=1 // pred_fallthru
      _
    // Predicated region
    $region22: #{tpu_custom_call.1} parent=1 // pred_check
      _
    $region23: #{tpu_custom_call.1} parent=1 // pred_check_branch
      %52 = sbr.rel (0) target = $region25
    $region24: #{tpu_custom_call.1} parent=1 // pred_region
      %53 = dma.done [#allocation3], 256
    $region25: #{tpu_custom_call.1} parent=1 // pred_fallthru
      _
    // Predicated region
    $region26: #{tpu_custom_call.1} parent=1 // pred_check
      _
    $region27: #{tpu_custom_call.1} parent=1 // pred_check_branch
      %55 = sbr.rel (0) target = $region29
    $region28: #{tpu_custom_call.1} parent=1 // pred_region
      %56 = dma.done [#allocation6], 6144
    $region29: #{tpu_custom_call.1} parent=1 // pred_fallthru
      _
    // Predicated region
    $region30: #{tpu_custom_call.1} parent=1 // pred_check
      _
    $region31: #{tpu_custom_call.1} parent=1 // pred_check_branch
      %58 = sbr.rel (0) target = $region33
    $region32: #{tpu_custom_call.1} parent=1 // pred_region
      %59 = dma.done [#allocation6], 3840
    $region33: #{tpu_custom_call.1} parent=1 // pred_fallthru
      _
    %v60 = vld [vmem:[#allocation2] sm:$0xff]
    %v61 = vld [vmem:[#allocation2 + $0x8] sm:$0xff]
    %v62 = vld [vmem:[#allocation5] sm:$0xff]
    %v63 = vld [vmem:[#allocation5 + $0x8] sm:$0xff]
    %v64 = vld [vmem:[#allocation5 + $0x10] sm:$0xff]
    %v65 = vld [vmem:[#allocation5 + $0x18] sm:$0xff]
    %v66 = vld [vmem:[#allocation5 + $0x20] sm:$0xff]
    %v67 = vld [vmem:[#allocation5 + $0x28] sm:$0xff]
    %v68 = vld [vmem:[#allocation5 + $0x30] sm:$0xff]
    %v69 = vld [vmem:[#allocation5 + $0x38] sm:$0xff]
    %v70 = vld [vmem:[#allocation5 + $0x40] sm:$0xff]
    %v71 = vld [vmem:[#allocation5 + $0x48] sm:$0xff]
    %v72 = vld [vmem:[#allocation5 + $0x50] sm:$0xff]
    %v73 = vld [vmem:[#allocation5 + $0x58] sm:$0xff]
    %v74 = vld [vmem:[#allocation5 + $0x60] sm:$0xff]
    %v75 = vld [vmem:[#allocation5 + $0x68] sm:$0xff]
    %v76 = vld [vmem:[#allocation5 + $0x70] sm:$0xff]
    %v77 = vld [vmem:[#allocation5 + $0x78] sm:$0xff]
    %v78 = vld [vmem:[#allocation5 + $0x80] sm:$0xff]
    %v79 = vld [vmem:[#allocation5 + $0x88] sm:$0xff]
    %v80 = vld [vmem:[#allocation5 + $0x90] sm:$0xff]
    %v81 = vld [vmem:[#allocation5 + $0x98] sm:$0xff]
    %v82 = vld [vmem:[#allocation5 + $0xa0] sm:$0xff]
    %v83 = vld [vmem:[#allocation5 + $0xa8] sm:$0xff]
    %v84 = vld [vmem:[#allocation5 + $0xb0] sm:$0xff]
    %v85 = vld [vmem:[#allocation5 + $0xb8] sm:$0xff]
    %v86 = vld [vmem:[#allocation5 + $0xc0] sm:$0xff]
    %v87 = vld [vmem:[#allocation5 + $0xc8] sm:$0xff]
    %v88 = vld [vmem:[#allocation5 + $0xd0] sm:$0xff]
    %v89 = vld [vmem:[#allocation5 + $0xd8] sm:$0xff]
    %v90 = vld [vmem:[#allocation5 + $0xe0] sm:$0xff]
    %v91 = vld [vmem:[#allocation5 + $0xe8] sm:$0xff]
    %v92 = vld [vmem:[#allocation5 + $0xf0] sm:$0xff]
    %v93 = vld [vmem:[#allocation5 + $0xf8] sm:$0xff]
    %v94 = vld [vmem:[#allocation5 + $0x100] sm:$0xff]
    %v95 = vld [vmem:[#allocation5 + $0x108] sm:$0xff]
    %v96 = vld [vmem:[#allocation5 + $0x110] sm:$0xff]
    %v97 = vld [vmem:[#allocation5 + $0x118] sm:$0xff]
    %v98 = vld [vmem:[#allocation5 + $0x120] sm:$0xff]
    %v99 = vld [vmem:[#allocation5 + $0x128] sm:$0xff]
    %v100 = vld [vmem:[#allocation5 + $0x130] sm:$0xff]
    %v101 = vld [vmem:[#allocation5 + $0x138] sm:$0xff]
    %v102 = vld [vmem:[#allocation5 + $0x140] sm:$0xff]
    %v103 = vld [vmem:[#allocation5 + $0x148] sm:$0xff]
    %v104 = vld [vmem:[#allocation5 + $0x150] sm:$0xff]
    %v105 = vld [vmem:[#allocation5 + $0x158] sm:$0xff]
    %v106 = vld [vmem:[#allocation5 + $0x160] sm:$0xff]
    %v107 = vld [vmem:[#allocation5 + $0x168] sm:$0xff]
    %v108 = vld [vmem:[#allocation5 + $0x170] sm:$0xff]
    %v109 = vld [vmem:[#allocation5 + $0x178] sm:$0xff]
    %v110 = vld [vmem:[%s2] sm:$0x3]
    %v112 = vlaneseq
    %v113 = vshrl.u32 %v112, 7
    %v114 = vsub.s32 0, %v113
    %v115 = vrot.slane %v110, %v114
    %v116 = vlaneseq
    %v117 = vshrl.u32 %v116, 7
    %v118 = vsub.s32 1, %v117
    %v119 = vrot.slane %v110, %v118
    %vm122 = vcmask 523264
    %v124 = vsel %vm122, %v61, 0
    %126 = vmatprep.subr.mxu0 %v63
    %127 = vmatpush1.msra.mxu0 %v62
    %128 = vmatprep.subr.mxu0 %v65
    %129 = vmatpush1.msra.mxu0 %v64
    %130 = vmatprep.subr.mxu0 %v67
    %131 = vmatpush1.msra.mxu0 %v66
    %132 = vmatprep.subr.mxu0 %v69
    %133 = vmatpush1.msra.mxu0 %v68
    %134 = vmatprep.subr.mxu0 %v71
    %135 = vmatpush1.msra.mxu0 %v70
    %136 = vmatprep.subr.mxu0 %v73
    %137 = vmatpush1.msra.mxu0 %v72
    %138 = vmatprep.subr.mxu0 %v75
    %139 = vmatpush1.msra.mxu0 %v74
    %140 = vmatprep.subr.mxu0 %v77
    %141 = vmatpush1.msra.mxu0 %v76
    %142 = vmatprep.subr.mxu0 %v79
    %143 = vmatpush1.msra.mxu0 %v78
    %144 = vmatprep.subr.mxu0 %v81
    %145 = vmatpush1.msra.mxu0 %v80
    %146 = vmatprep.subr.mxu0 %v83
    %147 = vmatpush1.msra.mxu0 %v82
    %148 = vmatprep.subr.mxu0 %v85
    %149 = vmatpush1.msra.mxu0 %v84
    %150 = vmatprep.subr.mxu0 %v87
    %151 = vmatpush1.msra.mxu0 %v86
    %152 = vmatprep.subr.mxu0 %v89
    %153 = vmatpush1.msra.mxu0 %v88
    %154 = vmatprep.subr.mxu0 %v91
    %155 = vmatpush1.msra.mxu0 %v90
    %156 = vmatprep.subr.mxu0 %v93
    %157 = vmatpush1.msra.mxu0 %v92
    %158 = vmatprep.subr.mxu0 %v95
    %159 = vmatpush1.msra.mxu0 %v94
    %160 = vmatprep.subr.mxu0 %v97
    %161 = vmatpush1.msra.mxu0 %v96
    %162 = vmatprep.subr.mxu0 %v99
    %163 = vmatpush1.msra.mxu0 %v98
    %164 = vmatprep.subr.mxu0 %v101
    %165 = vmatpush1.msra.mxu0 %v100
    %166 = vmatprep.subr.mxu0 %v103
    %167 = vmatpush1.msra.mxu0 %v102
    %168 = vmatprep.subr.mxu0 %v105
    %169 = vmatpush1.msra.mxu0 %v104
    %170 = vmatprep.subr.mxu0 %v107
    %171 = vmatpush1.msra.mxu0 %v106
    %172 = vmatprep.subr.mxu0 %v109
    %173 = vmatpush1.msra.mxu0 %v108
    %174 = vmatprep.subr.mxu0 0.0
    %175 = vmatpush1.msra.mxu0 0.0
    %176 = vmatprep.subr.mxu0 0.0
    %177 = vmatpush1.msra.mxu0 0.0
    %178 = vmatprep.subr.mxu0 0.0
    %179 = vmatpush1.msra.mxu0 0.0
    %180 = vmatprep.subr.mxu0 0.0
    %181 = vmatpush1.msra.mxu0 0.0
    %182 = vmatprep.subr.mxu0 0.0
    %183 = vmatpush1.msra.mxu0 0.0
    %184 = vmatprep.subr.mxu0 0.0
    %185 = vmatpush1.msra.mxu0 0.0
    %186 = vmatprep.subr.mxu0 0.0
    %187 = vmatpush1.msra.mxu0 0.0
    %188 = vmatprep.subr.mxu0 0.0
    %189 = vmatpush1.msra.mxu0 0.0
    %190 = vmatprep.mubr.f32.mxu0 %v124
    %191 = vmatmul.mubr.f32.gmra.mrb[0].mxu0 %v60
    %v192 = vpop.f32.mrb[0].mxu0
    %v193 = vadd.f32 %v115, %v192
    %v194 = vpop.f32.mrb[0].mxu0
    %v195 = vadd.f32 %v119, %v194
    %196 = vdwg.mxu0
    %v197 = vmax.f32 %v193, 0.0
    %v198 = vmax.f32 %v195, 0.0
    %v199 = vld [vmem:[#allocation7] sm:$0xff]
    %v200 = vld [vmem:[#allocation7 + $0x8] sm:$0xff]
    %v201 = vld [vmem:[#allocation7 + $0x10] sm:$0xff]
    %v202 = vld [vmem:[#allocation7 + $0x18] sm:$0xff]
    %v203 = vld [vmem:[#allocation7 + $0x20] sm:$0xff]
    %v204 = vld [vmem:[#allocation7 + $0x28] sm:$0xff]
    %v205 = vld [vmem:[#allocation7 + $0x30] sm:$0xff]
    %v206 = vld [vmem:[#allocation7 + $0x38] sm:$0xff]
    %v207 = vld [vmem:[#allocation7 + $0x40] sm:$0xff]
    %v208 = vld [vmem:[#allocation7 + $0x48] sm:$0xff]
    %v209 = vld [vmem:[#allocation7 + $0x50] sm:$0xff]
    %v210 = vld [vmem:[#allocation7 + $0x58] sm:$0xff]
    %v211 = vld [vmem:[#allocation7 + $0x60] sm:$0xff]
    %v212 = vld [vmem:[#allocation7 + $0x68] sm:$0xff]
    %v213 = vld [vmem:[#allocation7 + $0x70] sm:$0xff]
    %v214 = vld [vmem:[#allocation7 + $0x78] sm:$0xff]
    %v215 = vld [vmem:[#allocation7 + $0x80] sm:$0xff]
    %v216 = vld [vmem:[#allocation7 + $0x88] sm:$0xff]
    %v217 = vld [vmem:[#allocation7 + $0x90] sm:$0xff]
    %v218 = vld [vmem:[#allocation7 + $0x98] sm:$0xff]
    %v219 = vld [vmem:[#allocation7 + $0xa0] sm:$0xff]
    %v220 = vld [vmem:[#allocation7 + $0xa8] sm:$0xff]
    %v221 = vld [vmem:[#allocation7 + $0xb0] sm:$0xff]
    %v222 = vld [vmem:[#allocation7 + $0xb8] sm:$0xff]
    %v223 = vld [vmem:[#allocation7 + $0xc0] sm:$0xff]
    %v224 = vld [vmem:[#allocation7 + $0xc8] sm:$0xff]
    %v225 = vld [vmem:[#allocation7 + $0xd0] sm:$0xff]
    %v226 = vld [vmem:[#allocation7 + $0xd8] sm:$0xff]
    %v227 = vld [vmem:[#allocation7 + $0xe0] sm:$0xff]
    %v228 = vld [vmem:[#allocation7 + $0xe8] sm:$0xff]
    %v229 = vld [vmem:[%s4] sm:$0x1]
    %v231 = vlaneseq
    %v232 = vshrl.u32 %v231, 7
    %v233 = vsub.s32 0, %v232
    %v234 = vrot.slane %v229, %v233
    %vm236 = vcmask 916480
    %v238 = vsel %vm236, %v198, 0
    %240 = vmatprep.subr.mxu0 0.0
    %241 = vmatpush1.msra.mxu0 %v199
    %242 = vmatprep.subr.mxu0 0.0
    %243 = vmatpush1.msra.mxu0 %v200
    %244 = vmatprep.subr.mxu0 0.0
    %245 = vmatpush1.msra.mxu0 %v201
    %246 = vmatprep.subr.mxu0 0.0
    %247 = vmatpush1.msra.mxu0 %v202
    %248 = vmatprep.subr.mxu0 0.0
    %249 = vmatpush1.msra.mxu0 %v203
    %250 = vmatprep.subr.mxu0 0.0
    %251 = vmatpush1.msra.mxu0 %v204
    %252 = vmatprep.subr.mxu0 0.0
    %253 = vmatpush1.msra.mxu0 %v205
    %254 = vmatprep.subr.mxu0 0.0
    %255 = vmatpush1.msra.mxu0 %v206
    %256 = vmatprep.subr.mxu0 0.0
    %257 = vmatpush1.msra.mxu0 %v207
    %258 = vmatprep.subr.mxu0 0.0
    %259 = vmatpush1.msra.mxu0 %v208
    %260 = vmatprep.subr.mxu0 0.0
    %261 = vmatpush1.msra.mxu0 %v209
    %262 = vmatprep.subr.mxu0 0.0
    %263 = vmatpush1.msra.mxu0 %v210
    %264 = vmatprep.subr.mxu0 0.0
    %265 = vmatpush1.msra.mxu0 %v211
    %266 = vmatprep.subr.mxu0 0.0
    %267 = vmatpush1.msra.mxu0 %v212
    %268 = vmatprep.subr.mxu0 0.0
    %269 = vmatpush1.msra.mxu0 %v213
    %270 = vmatprep.subr.mxu0 0.0
    %271 = vmatpush1.msra.mxu0 %v214
    %272 = vmatprep.subr.mxu0 0.0
    %273 = vmatpush1.msra.mxu0 %v215
    %274 = vmatprep.subr.mxu0 0.0
    %275 = vmatpush1.msra.mxu0 %v216
    %276 = vmatprep.subr.mxu0 0.0
    %277 = vmatpush1.msra.mxu0 %v217
    %278 = vmatprep.subr.mxu0 0.0
    %279 = vmatpush1.msra.mxu0 %v218
    %280 = vmatprep.subr.mxu0 0.0
    %281 = vmatpush1.msra.mxu0 %v219
    %282 = vmatprep.subr.mxu0 0.0
    %283 = vmatpush1.msra.mxu0 %v220
    %284 = vmatprep.subr.mxu0 0.0
    %285 = vmatpush1.msra.mxu0 %v221
    %286 = vmatprep.subr.mxu0 0.0
    %287 = vmatpush1.msra.mxu0 %v222
    %288 = vmatprep.subr.mxu0 0.0
    %289 = vmatpush1.msra.mxu0 %v223
    %290 = vmatprep.subr.mxu0 0.0
    %291 = vmatpush1.msra.mxu0 %v224
    %292 = vmatprep.subr.mxu0 0.0
    %293 = vmatpush1.msra.mxu0 %v225
    %294 = vmatprep.subr.mxu0 0.0
    %295 = vmatpush1.msra.mxu0 %v226
    %296 = vmatprep.subr.mxu0 0.0
    %297 = vmatpush1.msra.mxu0 %v227
    %298 = vmatprep.subr.mxu0 0.0
    %299 = vmatpush1.msra.mxu0 %v228
    %300 = vmatprep.subr.mxu0 0.0
    %301 = vmatpush1.msra.mxu0 0.0
    %302 = vmatprep.subr.mxu0 0.0
    %303 = vmatpush1.msra.mxu0 0.0
    %304 = vmatprep.mubr.f32.mxu0 %v238
    %305 = vmatmul.mubr.f32.gmra.mrb[0].mxu0 %v197
    %v306 = vpop.f32.mrb[0].mxu0
    %v307 = vadd.f32 %v234, %v306
    %v308 = vpop.f32.mrb[0].mxu0
    %309 = vdwg.mxu0
    %310 = vst [vmem:[#allocation8] sm:$0xff] %v307
    // Predicated region
    $region34: #{tpu_custom_call.1} parent=1 // pred_check
      _
    $region35: #{tpu_custom_call.1} parent=1 // pred_check_branch
      %312 = sbr.rel (0) target = $region37
    $region36: #{tpu_custom_call.1} parent=1 // pred_region
      %s314 = ssub.s32 128, 128
      %315 = vsyncadd [#allocation4], %s314
      %s317 = sshll.u32 [#allocation8], 4
      %s318 = int_to_ptr.vmem [resolvable:$true] %s317
      %320 = dma.vmem_to_hbm [thread:$0]  %s318, 128, %s5, [#allocation4]
    $region37: #{tpu_custom_call.1} parent=1 // pred_fallthru
      _
    // Predicated region
    $region38: #{tpu_custom_call.1} parent=1 // pred_check
      _
    $region39: #{tpu_custom_call.1} parent=1 // pred_check_branch
      %322 = sbr.rel (0) target = $region41
    $region40: #{tpu_custom_call.1} parent=1 // pred_region
      %323 = dma.done [#allocation4], 128
    $region41: #{tpu_custom_call.1} parent=1 // pred_fallthru
      _
    %324 = vsyncpa [#allocation3], 1
    %325 = vsyncpa [#allocation6], 1
    %326 = vsyncpa [#allocation4], 1

</llo_original>
